<compile_context>
chip_gen: v7x
topology: tpu7x:2x2x1
jax: 0.10.0
libtpu: 0.0.40
codegen_flags: <defaults>
</compile_context>

<pallas_src>
import functools
import math

import jax
import jax.numpy as jnp
from jax.experimental import pallas as pl
from jax.experimental.pallas import tpu as pltpu


# Rows packed per 32-bit sublane word in the TPU tiled layout, keyed by itemsize.
_ROW_PACK = {4: 8, 2: 16, 1: 32}


def _row_pack(dtype) -> int:
    return _ROW_PACK.get(jnp.dtype(dtype).itemsize, 8)


def _num_chunks(rows: int) -> int:
    """Number of concurrent DMAs for a `rows`-row copy.

    A single DMA descriptor is typically bound by one HBM DMA queue; several
    in-flight DMAs are needed to approach v7x's ~3.2 TB/s (and help on v6e).
    For small copies extra descriptors are pure overhead, so gate on size.
    """
    if rows >= 32768:
        return 8
    if rows >= 8192:
        return 4
    if rows >= 2048:
        return 2
    return 1


def _chunk_bounds(rows: int, n_chunks: int, align: int):
    """Static (start, size) chunk bounds covering [0, rows).

    Every chunk start is a multiple of `align` (the dtype row packing) so each
    DMA stays on the fast tile-aligned path."""
    base = math.ceil(rows / n_chunks)
    base = ((base + align - 1) // align) * align
    bounds = []
    start = 0
    while start < rows:
        size = min(base, rows - start)
        bounds.append((start, size))
        start += size
    return tuple(bounds)


def _make_split_kernel(num_atoms: int, real_chunks, ghost_chunks):
    """Kernel: issue all HBM->HBM DMAs (real + ghost, chunked), then wait on
    all of them.  All offsets/sizes are static Python ints."""

    def kernel(x_hbm, real_hbm, ghost_hbm, sem):
        copies = []
        idx = 0
        for start, size in real_chunks:
            copies.append(
                pltpu.make_async_copy(
                    x_hbm.at[pl.ds(start, size), :],
                    real_hbm.at[pl.ds(start, size), :],
                    sem.at[idx],
                )
            )
            idx += 1
        for start, size in ghost_chunks:
            copies.append(
                pltpu.make_async_copy(
                    x_hbm.at[pl.ds(num_atoms + start, size), :],
                    ghost_hbm.at[pl.ds(start, size), :],
                    sem.at[idx],
                )
            )
            idx += 1
        # Start everything so all DMAs overlap, then wait on all of them.
        for cp in copies:
            cp.start()
        for cp in copies:
            cp.wait()

    return kernel


@functools.partial(jax.jit, static_argnames=("num_atoms",))
def _ghost_control_split_pallas(x: jax.Array, num_atoms: int):
    """Split x[N, F] into (x[:num_atoms], x[num_atoms:]) with direct HBM->HBM
    DMAs inside one grid-less Pallas kernel."""
    n_nodes, feat = x.shape
    num_ghost = n_nodes - num_atoms
    itemsize = jnp.dtype(x.dtype).itemsize
    pack = _row_pack(x.dtype)

    real_chunks = _chunk_bounds(num_atoms, _num_chunks(num_atoms), pack)
    ghost_chunks = _chunk_bounds(num_ghost, _num_chunks(num_ghost), pack)
    n_sems = len(real_chunks) + len(ghost_chunks)

    # Honest advisory byte count: padded lanes/sublanes are transferred too.
    padded_feat = ((feat + 127) // 128) * 128
    padded_rows = (
        ((num_atoms + pack - 1) // pack) + ((num_ghost + pack - 1) // pack)
    ) * pack
    bytes_accessed = 2 * padded_rows * padded_feat * itemsize  # read + write

    kernel = _make_split_kernel(num_atoms, real_chunks, ghost_chunks)

    real, ghost = pl.pallas_call(
        kernel,
        out_shape=(
            jax.ShapeDtypeStruct((num_atoms, feat), x.dtype),
            jax.ShapeDtypeStruct((num_ghost, feat), x.dtype),
        ),
        # Keep everything in HBM; the DMA engine does all data movement.
        in_specs=[pl.BlockSpec(memory_space=pl.ANY)],
        out_specs=(
            pl.BlockSpec(memory_space=pl.ANY),
            pl.BlockSpec(memory_space=pl.ANY),
        ),
        scratch_shapes=[pltpu.SemaphoreType.DMA((n_sems,))],
        cost_estimate=pl.CostEstimate(
            flops=0, transcendentals=0, bytes_accessed=bytes_accessed
        ),
    )(x)
    return real, ghost


def ghost_control_split(x: jax.Array, num_atoms: int):
    """Public wrapper: handles degenerate splits and the packing-misaligned
    sub-32-bit dtype case (falls back to the fusable XLA slice there)."""
    num_atoms = int(num_atoms)
    n_nodes = x.shape[0]

    # Degenerate splits (torch.tensor_split allows them) — no kernel needed.
    if num_atoms <= 0:
        return x[:0], x
    if num_atoms >= n_nodes:
        return x, x[n_nodes:]

    pack = _row_pack(x.dtype)
    if jnp.dtype(x.dtype).itemsize < 4 and num_atoms % pack != 0:
        # bf16/int8/fp8 pack `pack` rows per 32-bit sublane word in the tiled
        # HBM layout; a split point off that packing would force a slow
        # element-granularity DMA (or fail to lower).  The XLA slice is the
        # right tool here and fuses with neighbours.
        # TODO(synk): pad/bucket num_atoms upstream so this path never triggers.
        return x[:num_atoms], x[num_atoms:]

    return _ghost_control_split_pallas(x, num_atoms)


class GhostControlSplit:
    """JAX/Pallas port of sevenn.nn.ghost_control.GhostControlSplit.

    Operates on a dict ("AtomGraphData") with the same key conventions.
    No learnable parameters."""

    def __init__(
        self,
        data_key_x: str = "x",
        data_key_ghost: str = "x_ghost",
        data_key_num_atoms: str = "num_atoms",
        data_key_num_ghost: str = "num_ghosts",
        verbose: bool = False,
    ):
        self.KEY_X = data_key_x
        self.KEY_GHOST = data_key_ghost
        self.KEY_NUM_ATOMS = data_key_num_atoms
        self.KEY_NUM_GHOST = data_key_num_ghost
        self.verbose = verbose  # mirrors the module's print(len(x)) side-effect

    def __call__(self, data: dict) -> dict:
        x_full = data[self.KEY_X]
        num_atoms = int(data[self.KEY_NUM_ATOMS])  # static split point
        x_real, x_ghost = ghost_control_split(x_full, num_atoms)
        if self.verbose:
            print(x_real.shape[0])
            print(x_ghost.shape[0])
        data[self.KEY_X] = x_real
        data[self.KEY_GHOST] = x_ghost
        return data


if __name__ == "__main__":
    key = jax.random.PRNGKey(0)

    # Small, shape-consistent example: 24 nodes (16 real + 8 ghost), 256 channels.
    n_nodes, feat = 24, 256
    num_atoms = 16
    num_ghosts = n_nodes - num_atoms
    x = jax.random.normal(key, (n_nodes, feat), dtype=jnp.float32)

    data = {"x": x, "num_atoms": num_atoms, "num_ghosts": num_ghosts}
    module = GhostControlSplit()
    out = module(data)

    x_real = jax.block_until_ready(out["x"])
    x_ghost = jax.block_until_ready(out["x_ghost"])
    assert x_real.shape == (num_atoms, feat)
    assert x_ghost.shape == (num_ghosts, feat)
    assert jnp.array_equal(x_real, x[:num_atoms])
    assert jnp.array_equal(x_ghost, x[num_atoms:])

    # f32, sublane-misaligned split point (13 not a multiple of 8): the DMA
    # row offset handles it natively (validated path).
    r13, g13 = ghost_control_split(x, 13)
    assert jnp.array_equal(jax.block_until_ready(r13), x[:13])
    assert jnp.array_equal(jax.block_until_ready(g13), x[13:])

    # bf16, packing-aligned split (16 is a multiple of the bf16 packing of 16):
    # exercises the sub-32-bit DMA path on its fast aligned route.
    xb = x.astype(jnp.bfloat16)
    rb, gb = ghost_control_split(xb, 16)
    assert jnp.array_equal(jax.block_until_ready(rb), xb[:16])
    assert jnp.array_equal(jax.block_until_ready(gb), xb[16:])

    # bf16, packing-misaligned split -> safe XLA-slice fallback, still correct.
    rb2, gb2 = ghost_control_split(xb, 13)
    assert jnp.array_equal(jax.block_until_ready(rb2), xb[:13])
    assert jnp.array_equal(jax.block_until_ready(gb2), xb[13:])

    # Larger graph: exercises multiple concurrent DMAs per output (2 real + 2 ghost).
    big = jax.random.normal(jax.random.PRNGKey(0), (6144, 128), dtype=jnp.float32)
    rbig, gbig = ghost_control_split(big, 4096)
    assert jnp.array_equal(jax.block_until_ready(rbig), big[:4096])
    assert jnp.array_equal(jax.block_until_ready(gbig), big[4096:])

    print("KERNEL_OK")
</pallas_src>

<mosaic_0001>
module attributes {stable_mosaic.version = 11 : i64} {
  func.func @kernel(%arg0: memref<24x256xf32, #tpu.memory_space<any>>, %arg1: memref<16x256xf32, #tpu.memory_space<any>>, %arg2: memref<8x256xf32, #tpu.memory_space<any>>, %arg3: memref<2x!tpu.dma_semaphore, #tpu.memory_space<semaphore_mem>>) attributes {dimension_semantics = [], scalar_prefetch = 0 : i64, scratch_operands = 1 : i64, tpu.core_type = #tpu.core_type<tc>} {
    %c0_i32 = arith.constant 0 : i32
    %c0_i32_0 = arith.constant 0 : i32
    %c0_i32_1 = arith.constant 0 : i32
    %0 = tpu.memref_slice %arg0[%c0_i32_0, %c0_i32_1] : memref<24x256xf32, #tpu.memory_space<any>> -> memref<16x256xf32, #tpu.memory_space<any>>
    %c0_i32_2 = arith.constant 0 : i32
    %c0_i32_3 = arith.constant 0 : i32
    %1 = tpu.memref_slice %arg1[%c0_i32_2, %c0_i32_3] : memref<16x256xf32, #tpu.memory_space<any>> -> memref<16x256xf32, #tpu.memory_space<any>>
    %2 = tpu.memref_slice %arg3[%c0_i32] : memref<2x!tpu.dma_semaphore, #tpu.memory_space<semaphore_mem>> -> memref<1x!tpu.dma_semaphore, #tpu.memory_space<semaphore_mem>>
    %3 = tpu.memref_squeeze %2 : memref<1x!tpu.dma_semaphore, #tpu.memory_space<semaphore_mem>> -> memref<!tpu.dma_semaphore, #tpu.memory_space<semaphore_mem>>
    tpu.enqueue_dma source(%0 : memref<16x256xf32, #tpu.memory_space<any>>) target(%1 : memref<16x256xf32, #tpu.memory_space<any>>) target_semaphore(%3 : memref<!tpu.dma_semaphore, #tpu.memory_space<semaphore_mem>>)
    %c1_i32 = arith.constant 1 : i32
    %c16_i32 = arith.constant 16 : i32
    %c0_i32_4 = arith.constant 0 : i32
    %4 = tpu.memref_slice %arg0[%c16_i32, %c0_i32_4] : memref<24x256xf32, #tpu.memory_space<any>> -> memref<8x256xf32, #tpu.memory_space<any>>
    %c0_i32_5 = arith.constant 0 : i32
    %c0_i32_6 = arith.constant 0 : i32
    %5 = tpu.memref_slice %arg2[%c0_i32_5, %c0_i32_6] : memref<8x256xf32, #tpu.memory_space<any>> -> memref<8x256xf32, #tpu.memory_space<any>>
    %6 = tpu.memref_slice %arg3[%c1_i32] : memref<2x!tpu.dma_semaphore, #tpu.memory_space<semaphore_mem>> -> memref<1x!tpu.dma_semaphore, #tpu.memory_space<semaphore_mem>>
    %7 = tpu.memref_squeeze %6 : memref<1x!tpu.dma_semaphore, #tpu.memory_space<semaphore_mem>> -> memref<!tpu.dma_semaphore, #tpu.memory_space<semaphore_mem>>
    tpu.enqueue_dma source(%4 : memref<8x256xf32, #tpu.memory_space<any>>) target(%5 : memref<8x256xf32, #tpu.memory_space<any>>) target_semaphore(%7 : memref<!tpu.dma_semaphore, #tpu.memory_space<semaphore_mem>>)
    %c0_i32_7 = arith.constant 0 : i32
    %c0_i32_8 = arith.constant 0 : i32
    %c0_i32_9 = arith.constant 0 : i32
    %8 = tpu.memref_slice %arg0[%c0_i32_8, %c0_i32_9] : memref<24x256xf32, #tpu.memory_space<any>> -> memref<16x256xf32, #tpu.memory_space<any>>
    %c0_i32_10 = arith.constant 0 : i32
    %c0_i32_11 = arith.constant 0 : i32
    %9 = tpu.memref_slice %arg1[%c0_i32_10, %c0_i32_11] : memref<16x256xf32, #tpu.memory_space<any>> -> memref<16x256xf32, #tpu.memory_space<any>>
    %10 = tpu.memref_slice %arg3[%c0_i32_7] : memref<2x!tpu.dma_semaphore, #tpu.memory_space<semaphore_mem>> -> memref<1x!tpu.dma_semaphore, #tpu.memory_space<semaphore_mem>>
    %11 = tpu.memref_squeeze %10 : memref<1x!tpu.dma_semaphore, #tpu.memory_space<semaphore_mem>> -> memref<!tpu.dma_semaphore, #tpu.memory_space<semaphore_mem>>
    tpu.wait_dma2 semaphore(%11 : memref<!tpu.dma_semaphore, #tpu.memory_space<semaphore_mem>>) src(%8 : memref<16x256xf32, #tpu.memory_space<any>>) dst(%9 : memref<16x256xf32, #tpu.memory_space<any>>)
    %c1_i32_12 = arith.constant 1 : i32
    %c16_i32_13 = arith.constant 16 : i32
    %c0_i32_14 = arith.constant 0 : i32
    %12 = tpu.memref_slice %arg0[%c16_i32_13, %c0_i32_14] : memref<24x256xf32, #tpu.memory_space<any>> -> memref<8x256xf32, #tpu.memory_space<any>>
    %c0_i32_15 = arith.constant 0 : i32
    %c0_i32_16 = arith.constant 0 : i32
    %13 = tpu.memref_slice %arg2[%c0_i32_15, %c0_i32_16] : memref<8x256xf32, #tpu.memory_space<any>> -> memref<8x256xf32, #tpu.memory_space<any>>
    %14 = tpu.memref_slice %arg3[%c1_i32_12] : memref<2x!tpu.dma_semaphore, #tpu.memory_space<semaphore_mem>> -> memref<1x!tpu.dma_semaphore, #tpu.memory_space<semaphore_mem>>
    %15 = tpu.memref_squeeze %14 : memref<1x!tpu.dma_semaphore, #tpu.memory_space<semaphore_mem>> -> memref<!tpu.dma_semaphore, #tpu.memory_space<semaphore_mem>>
    tpu.wait_dma2 semaphore(%15 : memref<!tpu.dma_semaphore, #tpu.memory_space<semaphore_mem>>) src(%12 : memref<8x256xf32, #tpu.memory_space<any>>) dst(%13 : memref<8x256xf32, #tpu.memory_space<any>>)
    return
  }
}

</mosaic_0001>

<llo_original>
// kernel: _ghost_control_split_pallas.1
$region0: #{_ghost_control_split_pallas.1}
  #allocation0 [shape = 'u32[]', space=smem, size = 0x4, offset = 0x4, fixed_abs, tag = 'smem constant byte address 0x4 - core index']
  #allocation1 [shape = 'u32[144,128]{1,0:T(1,128)}', space=vmem, size = 0x12000, scoped, tag = 'internal scratch']
  #allocation2 [shape = 's32[2]{0}', space=sflag, size = 0x8, scoped, tag = 'scratch operand']
  #allocation3 [shape = 's32[]', space=sflag, size = 0x4, offset = 0, fixed_abs, tag = 'sflag constant byte address 0x0 - dummy sync flag']
  #allocation4 [shape = 'u32[0]{0}', space=smem, size = 0, offset = 0, fixed_abs, tag = 'smem constant byte address 0x0 - null']
  #allocation5 [shape = 's32[]', space=sflag, size = 0x4, offset = 0, fixed_abs, tag = 'sflag constant byte address 0x0 - dummy sync flag']
  #allocation6 [shape = 'u32[0]{0}', space=smem, size = 0, offset = 0, fixed_abs, tag = 'smem constant byte address 0x0 - null']
  %s0 = inlined_call_operand.hbm [shape: f32[24,256], index: 0, kind: input, shape index: {}]
  %s1 = inlined_call_operand.hbm [shape: f32[16,256], index: 1, kind: output, shape index: {0}]
  %s2 = inlined_call_operand.hbm [shape: f32[8,256], index: 2, kind: output, shape index: {1}]
  %3 = xla_tuple %s1, %s2
  %s4 = sld [smem:[#allocation0]]
  $region2: #{_ghost_control_split_pallas.1} parent=0
    _
  %s6 = ssub.s32 1, %s4
  %s7 = scalar_select 0, %s6, %s4
  %s9 = sshll.u32 1, 14
  %s10 = sxor.u32 4294967295, %s9
  %s13 = sshll.u32 3, 24
  %s14 = sxor.u32 4294967295, %s13
  %s15 = sand.u32 0, %s14
  %s17 = sor.u32 %s15, 0
  %20 = dma.general %s0, 512, %s1, [#allocation2], [#allocation3], [#allocation4], %s17, 0
  %s21 = scalar_lea.hbm %s0, 512
  %s22 = scalar_lea.sflag [#allocation2], 1
  %s24 = sshll.u32 1, 14
  %s25 = sxor.u32 4294967295, %s24
  %s28 = sshll.u32 3, 24
  %s29 = sxor.u32 4294967295, %s28
  %s30 = sand.u32 0, %s29
  %s32 = sor.u32 %s30, 0
  %35 = dma.general %s21, 256, %s2, %s22, [#allocation5], [#allocation6], %s32, 0
  %s36 = smul.u32 8, 2
  %s37 = smul.u32 %s36, 2
  %s38 = sshll.u32 %s37, 4
  %39 = dma.done [#allocation2], %s38
  %s40 = smul.u32 8, 1
  %s41 = smul.u32 %s40, 2
  %s42 = sshll.u32 %s41, 4
  %43 = dma.done %s22, %s42
  %44 = vsyncmov [#allocation2]
  %s45 = vpop.sfrf %44
  %p46 = scmp.eq.s32.totalorder %s45, 0
  %p47 = pneg %p46
  %49 = shalt.err (%p47)
  %s50 = scalar_lea.sflag [#allocation2], 1
  %51 = vsyncmov %s50
  %s52 = vpop.sfrf %51
  %p53 = scmp.eq.s32.totalorder %s52, 0
  %p54 = pneg %p53
  %56 = shalt.err (%p54)

</llo_original>
